<compile_context>
chip_gen: v7x
topology: tpu7x:2x2x1
jax: 0.10.0
libtpu: 0.0.40
codegen_flags: <defaults>
</compile_context>

<pallas_src>
import functools

import jax
import jax.numpy as jnp
from jax.experimental import pallas as pl
from jax.experimental.pallas import tpu as pltpu


# ----------------------------------------------------------------------------
# Kernel: one lane-tile of the all-tails score matmul
# ----------------------------------------------------------------------------
def _score_kernel(q_ref, ent_t_ref, out_ref):
    """q_ref:     (Bp, 2D)      query block, resident across the grid
       ent_t_ref: (2D, tile_n)  pre-transposed entity-table column tile
       out_ref:   (Bp, tile_n)  score tile
    """
    out_ref[...] = jnp.dot(
        q_ref[...], ent_t_ref[...], preferred_element_type=jnp.float32
    )


def _round_up(x, m):
    return ((x + m - 1) // m) * m


def _choose_tile_n(num_entities, two_d, table_itemsize, b_pad,
                   target_step_bytes=8 * 1024 * 1024,
                   vmem_budget_bytes=40 * 1024 * 1024,
                   min_grid=4):
    """Pick an entity-axis tile: ~target_step_bytes of table per grid step,
    at least `min_grid` tiles (v7x megacore), working set << 64 MiB VMEM."""
    tile = max(128, target_step_bytes // max(1, two_d * table_itemsize))
    # keep at least ~min_grid tiles so both v7x TensorCores get work
    tile = min(tile, _round_up(pl.cdiv(num_entities, min_grid), 128))
    # never larger than the (128-rounded) table itself
    tile = min(tile, _round_up(num_entities, 128))
    tile = max(128, (tile // 128) * 128)

    def working_set(t):
        return (2 * t * two_d * table_itemsize      # double-buffered table tiles
                + 2 * b_pad * t * 4                 # double-buffered f32 out tiles
                + 2 * b_pad * two_d * table_itemsize)  # q block (tiny)

    while tile > 128 and working_set(tile) > vmem_budget_bytes:
        tile -= 128
    return tile, working_set(tile)


# ----------------------------------------------------------------------------
# At-rest streaming table (build ONCE, reuse across forwards)
# ----------------------------------------------------------------------------
def prepare_score_table(entity_embeddings, dtype=jnp.float32):
    """Pre-transposed (2D, N) table for the all-tails score matmul.
    Use dtype=jnp.bfloat16 to halve HBM traffic (f32 accumulation is kept);
    on v7x a future fp8 table would halve it again (MXU has fp8, no int8)."""
    return jnp.asarray(entity_embeddings.T, dtype=dtype)


# ----------------------------------------------------------------------------
# Forward: gathers + tiny elementwise glue in plain JAX, hot matmul in Pallas
# ----------------------------------------------------------------------------
def complex_forward(entity_embeddings, relation_embeddings, entity_table_t,
                    samples, dimension):
    """Mirrors ComplEx.forward(samples).

    entity_embeddings:  (N, 2D) f32 row-major table (used for the B gathers)
    entity_table_t:     (2D, N) pre-transposed at-rest table (f32 or bf16),
                        built once with prepare_score_table().
    Returns (scores (B, N) f32, (f_lhs, f_rel, f_rhs) each (B, D) f32).
    """
    num_entities = entity_embeddings.shape[0]
    two_d = 2 * dimension
    assert entity_embeddings.shape[1] == two_d
    assert entity_table_t.shape == (two_d, num_entities)

    table_dtype = entity_table_t.dtype
    table_itemsize = jnp.dtype(table_dtype).itemsize

    # --- gathers (glue) ------------------------------------------------------
    lhs = entity_embeddings[samples[:, 0]]        # (B, 2D)
    rel = relation_embeddings[samples[:, 1]]      # (B, 2D)
    rhs = entity_embeddings[samples[:, 2]]        # (B, 2D)
    B = lhs.shape[0]

    l_re, l_im = lhs[:, :dimension], lhs[:, dimension:]
    r_re, r_im = rel[:, :dimension], rel[:, dimension:]
    t_re, t_im = rhs[:, :dimension], rhs[:, dimension:]

    # Query q = head * relation (complex multiply); the fused K=2D contraction
    # q @ [E_re | E_im]^T == q_re @ E_re^T + q_im @ E_im^T exactly.
    q = jnp.concatenate([l_re * r_re - l_im * r_im,
                         l_re * r_im + l_im * r_re], axis=1)       # (B, 2D) f32

    # Regularization factors (tiny elementwise; XLA fuses these with the gathers).
    f_lhs = jnp.sqrt(l_re * l_re + l_im * l_im)
    f_rel = jnp.sqrt(r_re * r_re + r_im * r_im)
    f_rhs = jnp.sqrt(t_re * t_re + t_im * t_im)

    # --- batch padding (unmasked sublane stores) -----------------------------
    sublane = 16 if table_itemsize < 4 else 8
    b_pad = _round_up(B, sublane)
    q_in = q.astype(table_dtype)
    if b_pad != B:
        q_in = jnp.pad(q_in, ((0, b_pad - B), (0, 0)))

    # --- entity-axis tiling --------------------------------------------------
    tile_n, working_set = _choose_tile_n(num_entities, two_d, table_itemsize, b_pad)
    grid = (pl.cdiv(num_entities, tile_n),)

    vmem_limit = int(min(max(2 * working_set, 32 * 1024 * 1024),
                         48 * 1024 * 1024))   # safe on v7x (64 MiB/TC) and v5e/v6e

    cost = pl.CostEstimate(
        flops=2 * b_pad * two_d * num_entities,
        transcendentals=0,
        bytes_accessed=(two_d * num_entities * table_itemsize   # table stream
                        + b_pad * num_entities * 4              # scores out
                        + b_pad * two_d * table_itemsize),      # q
    )

    scores = pl.pallas_call(
        _score_kernel,
        out_shape=jax.ShapeDtypeStruct((b_pad, num_entities), jnp.float32),
        grid_spec=pltpu.PrefetchScalarGridSpec(
            num_scalar_prefetch=0,
            grid=grid,
            in_specs=[
                # q: full block, resident across the grid (broadcast).
                pl.BlockSpec((b_pad, two_d), lambda j: (0, 0)),
                # pre-transposed table: one (2D, tile_n) column tile per step,
                # plain contraction -- no per-tile Mosaic transpose.
                pl.BlockSpec((two_d, tile_n), lambda j: (0, j)),
            ],
            out_specs=pl.BlockSpec((b_pad, tile_n), lambda j: (0, j)),
        ),
        compiler_params=pltpu.CompilerParams(
            dimension_semantics=("parallel",),   # shard tiles across TCs (v7x)
            vmem_limit_bytes=vmem_limit,
        ),
        cost_estimate=cost,
    )(q_in, entity_table_t)

    if b_pad != B:
        scores = scores[:B]

    return scores, (f_lhs, f_rel, f_rhs)


# ----------------------------------------------------------------------------
# Main
# ----------------------------------------------------------------------------
if __name__ == "__main__":
    key = jax.random.PRNGKey(0)

    # Small deterministic "dataset" consistent with the module's __init__.
    num_entities = 256
    num_relations = 16
    dimension = 32
    init_size = 0.001
    batch = 8

    k1, k2, k3 = jax.random.split(key, 3)
    # torch.rand -> uniform[0,1), then scaled by init_size.
    entity_embeddings = (
        jax.random.uniform(k1, (num_entities, 2 * dimension), jnp.float32) * init_size
    )
    relation_embeddings = (
        jax.random.uniform(k2, (num_relations, 2 * dimension), jnp.float32) * init_size
    )

    heads = jax.random.randint(k3, (batch,), 0, num_entities)
    rels = jax.random.randint(jax.random.fold_in(k3, 1), (batch,), 0, num_relations)
    tails = jax.random.randint(jax.random.fold_in(k3, 2), (batch,), 0, num_entities)
    samples = jnp.stack([heads, rels, tails], axis=1)  # (B, 3) int32

    # At-rest streaming tables: built ONCE, reused across every forward call.
    ent_t_f32 = prepare_score_table(entity_embeddings, jnp.float32)
    ent_t_bf16 = prepare_score_table(entity_embeddings, jnp.bfloat16)
    jax.block_until_ready(ent_t_f32)
    jax.block_until_ready(ent_t_bf16)

    fwd = jax.jit(functools.partial(complex_forward, dimension=dimension))

    # f32 path (exact against the reference).
    scores, (f_lhs, f_rel, f_rhs) = fwd(
        entity_embeddings, relation_embeddings, ent_t_f32, samples)
    jax.block_until_ready(scores)
    jax.block_until_ready(f_lhs)
    jax.block_until_ready(f_rel)
    jax.block_until_ready(f_rhs)

    # bf16-at-rest path (halves table HBM traffic; f32 accumulation).
    scores_bf16, _ = fwd(entity_embeddings, relation_embeddings, ent_t_bf16, samples)
    jax.block_until_ready(scores_bf16)

    # Pure-JAX reference check of the forward semantics.
    lhs = entity_embeddings[samples[:, 0]]
    rel = relation_embeddings[samples[:, 1]]
    rhs = entity_embeddings[samples[:, 2]]
    l_re, l_im = lhs[:, :dimension], lhs[:, dimension:]
    r_re, r_im = rel[:, :dimension], rel[:, dimension:]
    t_re, t_im = rhs[:, :dimension], rhs[:, dimension:]
    e_re, e_im = entity_embeddings[:, :dimension], entity_embeddings[:, dimension:]
    ref_scores = (l_re * r_re - l_im * r_im) @ e_re.T + (l_re * r_im + l_im * r_re) @ e_im.T
    ref_f_lhs = jnp.sqrt(l_re**2 + l_im**2)
    ref_f_rel = jnp.sqrt(r_re**2 + r_im**2)
    ref_f_rhs = jnp.sqrt(t_re**2 + t_im**2)

    assert scores.shape == (batch, num_entities)
    assert jnp.allclose(scores, ref_scores, atol=1e-6, rtol=1e-5)
    assert jnp.allclose(f_lhs, ref_f_lhs, atol=1e-7)
    assert jnp.allclose(f_rel, ref_f_rel, atol=1e-7)
    assert jnp.allclose(f_rhs, ref_f_rhs, atol=1e-7)

    # bf16 path: loose tolerance (bf16 mantissa on the streamed table / q).
    assert scores_bf16.shape == (batch, num_entities)
    assert bool(jnp.all(jnp.isfinite(scores_bf16)))
    assert jnp.allclose(scores_bf16, ref_scores, atol=2e-6, rtol=5e-2)

    print("KERNEL_OK")
</pallas_src>

<mosaic_0001>
module attributes {stable_mosaic.version = 11 : i64} {
  func.func @_score_kernel(%arg0: i32, %arg1: memref<8x64xf32, #tpu.memory_space<vmem>>, %arg2: memref<64x128xf32, #tpu.memory_space<vmem>>, %arg3: memref<8x128xf32, #tpu.memory_space<vmem>>) attributes {dimension_semantics = [#tpu.dimension_semantics<parallel>], iteration_bounds = array<i64: 2>, scalar_prefetch = 0 : i64, scratch_operands = 0 : i64, tpu.core_type = #tpu.core_type<tc>, window_params = [{pipeline_mode = #tpu.pipeline_mode<synchronous>, transform_indices = @transform_0, window_bounds = array<i64: 8, 64>}, {transform_indices = @transform_1, window_bounds = array<i64: 64, 128>}, {transform_indices = @transform_2, window_bounds = array<i64: 8, 128>}]} {
    %c0 = arith.constant 0 : index
    %c0_0 = arith.constant 0 : index
    %0 = vector.load %arg1[%c0, %c0_0] : memref<8x64xf32, #tpu.memory_space<vmem>>, vector<8x64xf32>
    %c0_1 = arith.constant 0 : index
    %c0_2 = arith.constant 0 : index
    %1 = vector.load %arg2[%c0_1, %c0_2] : memref<64x128xf32, #tpu.memory_space<vmem>>, vector<64x128xf32>
    %cst = arith.constant dense<0.000000e+00> : vector<8x128xf32>
    %2 = tpu.matmul %0, %1, %cst {dimension_numbers = #tpu.dot_dimension_numbers<[1], [0], [0], [1], [0, 0, 1, 1], [], []>} : vector<8x64xf32>, vector<64x128xf32>, vector<8x128xf32> -> vector<8x128xf32>
    %c0_3 = arith.constant 0 : index
    %c0_4 = arith.constant 0 : index
    %3 = vector.load %arg3[%c0_3, %c0_4] : memref<8x128xf32, #tpu.memory_space<vmem>>, vector<8x128xf32>
    tpu.vector_store %arg3[%c0_3, %c0_4], %2 {strides = array<i32>} : memref<8x128xf32, #tpu.memory_space<vmem>>, vector<8x128xf32>,
    return
  }
  func.func @transform_0(%arg0: i32) -> (i32, i32) {
    %c0_i32 = arith.constant 0 : i32
    %c0_i32_0 = arith.constant 0 : i32
    %c0_i32_1 = arith.constant 0 : i32
    return %c0_i32, %c0_i32_0 : i32, i32
  }
  func.func @transform_1(%arg0: i32) -> (i32, i32) {
    %c0_i32 = arith.constant 0 : i32
    %c0_i32_0 = arith.constant 0 : i32
    return %c0_i32, %arg0 : i32, i32
  }
  func.func @transform_2(%arg0: i32) -> (i32, i32) {
    %c0_i32 = arith.constant 0 : i32
    %c0_i32_0 = arith.constant 0 : i32
    return %c0_i32, %arg0 : i32, i32
  }
}

</mosaic_0001>

<llo_original>
// kernel: complex_forward.1
$region0: #{complex_forward.1}
  #allocation0 [shape = 'u32[]', space=smem, size = 0x4, offset = 0x4, fixed_abs, tag = 'smem constant byte address 0x4 - core index']
  #allocation1 [shape = 'u32[144,128]{1,0:T(1,128)}', space=vmem, size = 0x12000, scoped, tag = 'internal scratch']
  %s0 = inlined_call_operand.vmem [shape: f32[8,64], index: 0, kind: input, shape index: {}]
  %s1 = inlined_call_operand.vmem [shape: f32[64,256], index: 1, kind: input, shape index: {}]
  %s2 = inlined_call_operand.hbm [shape: f32[8,256], index: 2, kind: output, shape index: {}]
  %s3 = sld [smem:[#allocation0]]
  $region79: #{complex_forward.1} parent=0
    _
  %s5 = ssub.s32 1, %s3
  %s6 = scalar_select 0, %s5, %s3
  $region1: #{complex_forward.1} parent=0
    #allocation2 [shape = 'u8[65536]{0}', space=vmem, size = 0x10000, scoped, tag = 'input window, operand 1']
    #allocation3 [shape = 'u8[8192]{0}', space=vmem, size = 0x2000, scoped, tag = 'output window, operand 0']
    #allocation4 [shape = 's32[2]{0}', space=sflag, size = 0x8, scoped, tag = 'scoped memory for complex_forward.1']
    %7 = vsyncpa [#allocation4], 0
    %s8 = scalar_lea.sflag [#allocation4], 1
    %9 = vsyncpa %s8, 0
    loop: start=0, step=1, limit=4
    $region2: #{complex_forward.1} parent=1 // loop_pre_header
      _
    $region3: #{complex_forward.1} parent=1 // loop_header
      %s11 = sphi 0, %s15
      %p12 = scmp.ge.s32.totalorder %s11, 4
      %s19 = sphi 0, %s19
      %s21 = sphi 0, %s19
      %s22 = sphi 0, %s21
      %s36 = sphi 0, %s22
      %s42 = sphi 0, %s44
      %s45 = sphi 0, %s42
      %s46 = sphi 0, %s45
      %s62 = sphi 0, %s46
      %s68 = sphi 0, %s70
      %s71 = sphi 0, %s68
      %s72 = sphi 0, %s71
      %s88 = sphi 0, %s72
    $region4: #{complex_forward.1} parent=1 // loop_header_branch
      %14 = sbr.rel (%p12) target = $region8
    $region5: #{complex_forward.1} parent=1 // loop_body
      %s16 = ssub.s32 %s11, 1
      %s17 = ssub.s32 %s11, 2
      %s18 = sadd.s32 %s11, 1
      %s20 = sadd.s32 %s19, 1
      %p23 = scmp.eq.s32.totalorder %s11, 1
      %p24 = scmp.ne.s32.totalorder %s19, %s21
      %p25 = scmp.eq.s32.totalorder %s11, 0
      %p26 = por %p24, %p25
      %p27 = scmp.ne.s32.totalorder %s19, %s21
      %p28 = scmp.eq.s32.totalorder %s16, 1
      %p29 = por %p27, %p28
      %p30 = scmp.ne.s32.totalorder %s21, %s22
      %p31 = scmp.eq.s32.totalorder %s16, 0
      %p32 = por %p30, %p31
      %p33 = scmp.ne.s32.totalorder %s21, %s22
      %p34 = scmp.eq.s32.totalorder %s17, 1
      %p35 = por %p33, %p34
      %p37 = scmp.ne.s32.totalorder %s22, %s36
      %p38 = scmp.eq.s32.totalorder %s17, 0
      %p39 = por %p37, %p38
      %s40 = ssub.s32 %s11, %s18
      %p41 = scmp.eq.s32.totalorder %s40, 0
      %s43 = sadd.s32 %s42, 1
      %s44 = scalar_select %p41, %s42, %s43
      %p47 = pneg %p41
      %p48 = scmp.eq.s32.totalorder %s11, 1
      %p49 = por %p47, %p48
      %p50 = scmp.ne.s32.totalorder %s42, %s45
      %p51 = scmp.eq.s32.totalorder %s11, 0
      %p52 = por %p50, %p51
      %p53 = scmp.ne.s32.totalorder %s42, %s45
      %p54 = scmp.eq.s32.totalorder %s16, 1
      %p55 = por %p53, %p54
      %p56 = scmp.ne.s32.totalorder %s45, %s46
      %p57 = scmp.eq.s32.totalorder %s16, 0
      %p58 = por %p56, %p57
      %p59 = scmp.ne.s32.totalorder %s45, %s46
      %p60 = scmp.eq.s32.totalorder %s17, 1
      %p61 = por %p59, %p60
      %p63 = scmp.ne.s32.totalorder %s46, %s62
      %p64 = scmp.eq.s32.totalorder %s17, 0
      %p65 = por %p63, %p64
      %s66 = ssub.s32 %s11, %s18
      %p67 = scmp.eq.s32.totalorder %s66, 0
      %s69 = sadd.s32 %s68, 1
      %s70 = scalar_select %p67, %s68, %s69
      %p73 = pneg %p67
      %p74 = scmp.eq.s32.totalorder %s11, 1
      %p75 = por %p73, %p74
      %p76 = scmp.ne.s32.totalorder %s68, %s71
      %p77 = scmp.eq.s32.totalorder %s11, 0
      %p78 = por %p76, %p77
      %p79 = scmp.ne.s32.totalorder %s68, %s71
      %p80 = scmp.eq.s32.totalorder %s16, 1
      %p81 = por %p79, %p80
      %p82 = scmp.ne.s32.totalorder %s71, %s72
      %p83 = scmp.eq.s32.totalorder %s16, 0
      %p84 = por %p82, %p83
      %p85 = scmp.ne.s32.totalorder %s71, %s72
      %p86 = scmp.eq.s32.totalorder %s17, 1
      %p87 = por %p85, %p86
      %p89 = scmp.ne.s32.totalorder %s72, %s88
      %p90 = scmp.eq.s32.totalorder %s17, 0
      %p91 = por %p89, %p90
      %p92 = scmp.le.s32.totalorder 1, %s11
      %p93 = scmp.lt.s32.totalorder %s11, 3
      %p94 = pnand %p92, %p93
      %p95 = pneg %p94
      // Predicated region
      $region9: #{complex_forward.1} parent=5 // pred_check
        _
      $region10: #{complex_forward.1} parent=5 // pred_check_branch
        %97 = sbr.rel (%p94) target = $region12
      $region11: #{complex_forward.1} parent=5 // pred_region
        %s98 = ssub.s32 %s11, 1
        // Predicated region
        $region13: #{complex_forward.1} parent=11 // pred_check
          %p99 = pneg %p32
        $region14: #{complex_forward.1} parent=11 // pred_check_branch
          %101 = sbr.rel (%p99) target = $region16
        $region15: #{complex_forward.1} parent=11 // pred_region
          _
        $region16: #{complex_forward.1} parent=11 // pred_fallthru
          _
      $region12: #{complex_forward.1} parent=5 // pred_fallthru
        _
      %p102 = scmp.lt.s32.totalorder %s11, 2
      // Predicated region
      $region17: #{complex_forward.1} parent=5 // pred_check
        %p103 = pneg %p102
      $region18: #{complex_forward.1} parent=5 // pred_check_branch
        %105 = sbr.rel (%p103) target = $region20
      $region19: #{complex_forward.1} parent=5 // pred_region
        // Predicated region
        $region21: #{complex_forward.1} parent=19 // pred_check
          %p106 = pneg %p52
        $region22: #{complex_forward.1} parent=19 // pred_check_branch
          %108 = sbr.rel (%p106) target = $region24
        $region23: #{complex_forward.1} parent=19 // pred_region
          %s109 = sand.u32 %s42, 1
          %s110 = sand.u32 %s42, 1
          %s111 = smul.addr %s110, 64
          %s112 = scalar_lea.vmem [#allocation2], %s111
          %s113 = smul.addr %s11, 8
          %s114 = scalar_lea.vmem %s1, %s113
          // Predicated region
          $region25: #{complex_forward.1} parent=23 // pred_check
            _
          $region26: #{complex_forward.1} parent=23 // pred_check_branch
            %116 = sbr.rel (0) target = $region28
          $region27: #{complex_forward.1} parent=23 // pred_region
            // Predicated region
            $region29: #{complex_forward.1} parent=27 // pred_check
              _
            $region30: #{complex_forward.1} parent=27 // pred_check_branch
              %118 = sbr.rel (0) target = $region32
            $region31: #{complex_forward.1} parent=27 // pred_region
              // Predicated region
              $region44: #{complex_forward.1} parent=31 // pred_check
                _
              $region45: #{complex_forward.1} parent=31 // pred_check_branch
                %147 = sbr.rel (0) target = $region47
              $region46: #{complex_forward.1} parent=31 // pred_region
                loop: start=0, step=1, limit=1
                $region48: #{complex_forward.1} parent=46 // loop_pre_header
                  _
                $region49: #{complex_forward.1} parent=46 // loop_header
                  %s149 = sphi 0, %s153
                  %p150 = scmp.ge.s32.totalorder %s149, 1
                  %s154 = sphi %s114, %s114
                  %s155 = sphi %s112, %s112
                $region50: #{complex_forward.1} parent=46 // loop_header_branch
                  %152 = sbr.rel (%p150) target = $region54
                $region51: #{complex_forward.1} parent=46 // loop_body
                  %v156 = vld [vmem:[%s154] sm:$0xff]
                  %157 = vst [vmem:[%s155] sm:$0xff] %v156
                  %v158 = vld [vmem:[%s154 + $0x10] sm:$0xff]
                  %159 = vst [vmem:[%s155 + $0x8] sm:$0xff] %v158
                  %v160 = vld [vmem:[%s154 + $0x20] sm:$0xff]
                  %161 = vst [vmem:[%s155 + $0x10] sm:$0xff] %v160
                  %v162 = vld [vmem:[%s154 + $0x30] sm:$0xff]
                  %163 = vst [vmem:[%s155 + $0x18] sm:$0xff] %v162
                  %v164 = vld [vmem:[%s154 + $0x40] sm:$0xff]
                  %165 = vst [vmem:[%s155 + $0x20] sm:$0xff] %v164
                  %v166 = vld [vmem:[%s154 + $0x50] sm:$0xff]
                  %167 = vst [vmem:[%s155 + $0x28] sm:$0xff] %v166
                  %v168 = vld [vmem:[%s154 + $0x60] sm:$0xff]
                  %169 = vst [vmem:[%s155 + $0x30] sm:$0xff] %v168
                  %v170 = vld [vmem:[%s154 + $0x70] sm:$0xff]
                  %171 = vst [vmem:[%s155 + $0x38] sm:$0xff] %v170
                $region52: #{complex_forward.1} parent=46 // loop_footer
                  %s153 = sadd.s32 1, %s149
                $region53: #{complex_forward.1} parent=46 // loop_footer_branch
                  %148 = sbr.rel target = $region49
                $region54: #{complex_forward.1} parent=46 // loop_exit
                  _
              $region47: #{complex_forward.1} parent=31 // pred_fallthru
                _
              // Predicated region
              $region55: #{complex_forward.1} parent=31 // pred_check
                _
              $region56: #{complex_forward.1} parent=31 // pred_check_branch
                %173 = sbr.rel target = $region58
              $region57: #{complex_forward.1} parent=31 // pred_region
                _
              $region58: #{complex_forward.1} parent=31 // pred_fallthru
                _
            $region32: #{complex_forward.1} parent=27 // pred_fallthru
              _
            // Predicated region
            $region33: #{complex_forward.1} parent=27 // pred_check
              _
            $region34: #{complex_forward.1} parent=27 // pred_check_branch
              %120 = sbr.rel target = $region36
            $region35: #{complex_forward.1} parent=27 // pred_region
              loop: start=0, step=1, limit=1
              $region37: #{complex_forward.1} parent=35 // loop_pre_header
                _
              $region38: #{complex_forward.1} parent=35 // loop_header
                %s123 = sphi 0, %s127
                %p124 = scmp.ge.s32.totalorder %s123, 1
                %s128 = sphi %s114, %s114
                %s129 = sphi %s112, %s112
              $region39: #{complex_forward.1} parent=35 // loop_header_branch
                %126 = sbr.rel (%p124) target = $region43
              $region40: #{complex_forward.1} parent=35 // loop_body
                %v130 = vld [vmem:[%s128] sm:$0xff]
                %131 = vst [vmem:[%s129] sm:$0xff] %v130
                %v132 = vld [vmem:[%s128 + $0x10] sm:$0xff]
                %133 = vst [vmem:[%s129 + $0x8] sm:$0xff] %v132
                %v134 = vld [vmem:[%s128 + $0x20] sm:$0xff]
                %135 = vst [vmem:[%s129 + $0x10] sm:$0xff] %v134
                %v136 = vld [vmem:[%s128 + $0x30] sm:$0xff]
                %137 = vst [vmem:[%s129 + $0x18] sm:$0xff] %v136
                %v138 = vld [vmem:[%s128 + $0x40] sm:$0xff]
                %139 = vst [vmem:[%s129 + $0x20] sm:$0xff] %v138
                %v140 = vld [vmem:[%s128 + $0x50] sm:$0xff]
                %141 = vst [vmem:[%s129 + $0x28] sm:$0xff] %v140
                %v142 = vld [vmem:[%s128 + $0x60] sm:$0xff]
                %143 = vst [vmem:[%s129 + $0x30] sm:$0xff] %v142
                %v144 = vld [vmem:[%s128 + $0x70] sm:$0xff]
                %145 = vst [vmem:[%s129 + $0x38] sm:$0xff] %v144
              $region41: #{complex_forward.1} parent=35 // loop_footer
                %s127 = sadd.s32 1, %s123
              $region42: #{complex_forward.1} parent=35 // loop_footer_branch
                %122 = sbr.rel target = $region38
              $region43: #{complex_forward.1} parent=35 // loop_exit
                _
            $region36: #{complex_forward.1} parent=27 // pred_fallthru
              _
          $region28: #{complex_forward.1} parent=23 // pred_fallthru
            _
          %174 = vnop
        $region24: #{complex_forward.1} parent=19 // pred_fallthru
          _
      $region20: #{complex_forward.1} parent=5 // pred_fallthru
        _
      %p175 = scmp.le.s32.totalorder 1, %s11
      %p176 = scmp.lt.s32.totalorder %s11, 3
      %p177 = pnand %p175, %p176
      %p178 = pneg %p177
      // Predicated region
      $region59: #{complex_forward.1} parent=5 // pred_check
        _
      $region60: #{complex_forward.1} parent=5 // pred_check_branch
        %180 = sbr.rel (%p177) target = $region62
      $region61: #{complex_forward.1} parent=5 // pred_region
        %s181 = ssub.s32 %s11, 1
        %s182 = sand.u32 %s45, 1
        %s183 = sand.u32 %s45, 1
        %s184 = smul.addr %s183, 64
        %s185 = scalar_lea.vmem [#allocation2], %s184
        // Predicated region
        $region63: #{complex_forward.1} parent=61 // pred_check
          %p186 = pneg %p58
        $region64: #{complex_forward.1} parent=61 // pred_check_branch
          %188 = sbr.rel (%p186) target = $region66
        $region65: #{complex_forward.1} parent=61 // pred_region
          _
        $region66: #{complex_forward.1} parent=61 // pred_fallthru
          _
        %p189 = pneg %p32
        %p190 = pneg %p29
        %s191 = sand.u32 %s45, 1
        %s192 = sand.u32 %s45, 1
        %s193 = smul.addr %s192, 64
        %s194 = scalar_lea.vmem [#allocation2], %s193
        %p195 = pneg %p58
        %p196 = pneg %p55
        %p197 = pneg %p84
        %p198 = pneg %p81
        %s199 = sand.u32 %s71, 1
        %s200 = scalar_lea.sflag [#allocation4], %s199
        %s201 = sand.u32 %s71, 1
        %s202 = smul.addr %s201, 8
        %s203 = scalar_lea.vmem [#allocation3], %s202
        %v204 = vld [vmem:[%s0] sm:$0xff]
        %v205 = vld [vmem:[%s185] sm:$0xff]
        %v206 = vld [vmem:[%s185 + $0x8] sm:$0xff]
        %v207 = vld [vmem:[%s185 + $0x10] sm:$0xff]
        %v208 = vld [vmem:[%s185 + $0x18] sm:$0xff]
        %v209 = vld [vmem:[%s185 + $0x20] sm:$0xff]
        %v210 = vld [vmem:[%s185 + $0x28] sm:$0xff]
        %v211 = vld [vmem:[%s185 + $0x30] sm:$0xff]
        %v212 = vld [vmem:[%s185 + $0x38] sm:$0xff]
        %vm213 = vcmask 523264
        %v215 = vsel %vm213, %v204, 0
        %217 = vmatprep.subr.mxu0 0.0
        %218 = vmatpush1.msra.mxu0 %v205
        %219 = vmatprep.subr.mxu0 0.0
        %220 = vmatpush1.msra.mxu0 %v206
        %221 = vmatprep.subr.mxu0 0.0
        %222 = vmatpush1.msra.mxu0 %v207
        %223 = vmatprep.subr.mxu0 0.0
        %224 = vmatpush1.msra.mxu0 %v208
        %225 = vmatprep.subr.mxu0 0.0
        %226 = vmatpush1.msra.mxu0 %v209
        %227 = vmatprep.subr.mxu0 0.0
        %228 = vmatpush1.msra.mxu0 %v210
        %229 = vmatprep.subr.mxu0 0.0
        %230 = vmatpush1.msra.mxu0 %v211
        %231 = vmatprep.subr.mxu0 0.0
        %232 = vmatpush1.msra.mxu0 %v212
        %233 = vmatprep.subr.mxu0 0.0
        %234 = vmatpush1.msra.mxu0 0.0
        %235 = vmatprep.subr.mxu0 0.0
        %236 = vmatpush1.msra.mxu0 0.0
        %237 = vmatprep.subr.mxu0 0.0
        %238 = vmatpush1.msra.mxu0 0.0
        %239 = vmatprep.subr.mxu0 0.0
        %240 = vmatpush1.msra.mxu0 0.0
        %241 = vmatprep.subr.mxu0 0.0
        %242 = vmatpush1.msra.mxu0 0.0
        %243 = vmatprep.subr.mxu0 0.0
        %244 = vmatpush1.msra.mxu0 0.0
        %245 = vmatprep.subr.mxu0 0.0
        %246 = vmatpush1.msra.mxu0 0.0
        %247 = vmatprep.subr.mxu0 0.0
        %248 = vmatpush1.msra.mxu0 0.0
        %249 = vmatprep.subr.mxu0 0.0
        %250 = vmatpush1.msra.mxu0 0.0
        %251 = vmatprep.subr.mxu0 0.0
        %252 = vmatpush1.msra.mxu0 0.0
        %253 = vmatprep.subr.mxu0 0.0
        %254 = vmatpush1.msra.mxu0 0.0
        %255 = vmatprep.subr.mxu0 0.0
        %256 = vmatpush1.msra.mxu0 0.0
        %257 = vmatprep.subr.mxu0 0.0
        %258 = vmatpush1.msra.mxu0 0.0
        %259 = vmatprep.subr.mxu0 0.0
        %260 = vmatpush1.msra.mxu0 0.0
        %261 = vmatprep.subr.mxu0 0.0
        %262 = vmatpush1.msra.mxu0 0.0
        %263 = vmatprep.subr.mxu0 0.0
        %264 = vmatpush1.msra.mxu0 0.0
        %265 = vmatprep.subr.mxu0 0.0
        %266 = vmatpush1.msra.mxu0 0.0
        %267 = vmatprep.subr.mxu0 0.0
        %268 = vmatpush1.msra.mxu0 0.0
        %269 = vmatprep.subr.mxu0 0.0
        %270 = vmatpush1.msra.mxu0 0.0
        %271 = vmatprep.subr.mxu0 0.0
        %272 = vmatpush1.msra.mxu0 0.0
        %273 = vmatprep.subr.mxu0 0.0
        %274 = vmatpush1.msra.mxu0 0.0
        %275 = vmatprep.subr.mxu0 0.0
        %276 = vmatpush1.msra.mxu0 0.0
        %277 = vmatprep.subr.mxu0 0.0
        %278 = vmatpush1.msra.mxu0 0.0
        %279 = vmatprep.subr.mxu0 0.0
        %280 = vmatpush1.msra.mxu0 0.0
        %281 = vmatprep.mubr.f32.mxu0 0.0
        %282 = vmatmul.mubr.f32.gmra.mrb[0].mxu0 %v215
        %v283 = vpop.f32.mrb[0].mxu0
        %v284 = vadd.f32 0.0, %v283
        %v285 = vpop.f32.mrb[0].mxu0
        %286 = vdwg.mxu0
        %287 = vst [vmem:[%s203] sm:$0xff] %v284
        %s288 = sand.u32 %s71, 1
        %s289 = scalar_lea.sflag [#allocation4], %s288
        %s290 = sand.u32 %s71, 1
        %s291 = smul.addr %s290, 8
        %s292 = scalar_lea.vmem [#allocation3], %s291
        // Predicated region
        $region67: #{complex_forward.1} parent=61 // pred_check
          %p293 = pneg %p81
        $region68: #{complex_forward.1} parent=61 // pred_check_branch
          %295 = sbr.rel (%p293) target = $region70
        $region69: #{complex_forward.1} parent=61 // pred_region
          %s297 = ssub.s32 128, 128
          %298 = vsyncadd %s289, %s297
          %s299 = smul.addr %s16, 128
          %s300 = scalar_lea.hbm %s2, %s299
          %s302 = sshll.u32 %s292, 4
          %s303 = int_to_ptr.vmem [resolvable:$true] %s302
          %305 = dma.vmem_to_hbm [thread:$0]  %s303, 128, %s300, %s289
        $region70: #{complex_forward.1} parent=61 // pred_fallthru
          _
      $region62: #{complex_forward.1} parent=5 // pred_fallthru
        _
      %p306 = scmp.le.s32.totalorder 2, %s11
      // Predicated region
      $region71: #{complex_forward.1} parent=5 // pred_check
        %p307 = pneg %p306
      $region72: #{complex_forward.1} parent=5 // pred_check_branch
        %309 = sbr.rel (%p307) target = $region74
      $region73: #{complex_forward.1} parent=5 // pred_region
        %s310 = ssub.s32 %s11, 2
        // Predicated region
        $region75: #{complex_forward.1} parent=73 // pred_check
          %p311 = pneg %p87
        $region76: #{complex_forward.1} parent=73 // pred_check_branch
          %313 = sbr.rel (%p311) target = $region78
        $region77: #{complex_forward.1} parent=73 // pred_region
          %s314 = sand.u32 %s72, 1
          %s315 = scalar_lea.sflag [#allocation4], %s314
          %s316 = sand.u32 %s72, 1
          %s317 = smul.addr %s316, 8
          %s318 = scalar_lea.vmem [#allocation3], %s317
          %319 = dma.done %s315, 128
        $region78: #{complex_forward.1} parent=73 // pred_fallthru
          _
      $region74: #{complex_forward.1} parent=5 // pred_fallthru
        _
    $region6: #{complex_forward.1} parent=1 // loop_footer
      %s15 = sadd.s32 1, %s11
    $region7: #{complex_forward.1} parent=1 // loop_footer_branch
      %10 = sbr.rel target = $region3
    $region8: #{complex_forward.1} parent=1 // loop_exit
      _
    %320 = vsyncpa [#allocation4], 1
    %s321 = scalar_lea.sflag [#allocation4], 1
    %322 = vsyncpa %s321, 1

</llo_original>
